<compile_context>
chip_gen: v7x
topology: tpu7x:2x2x1
jax: 0.10.0
libtpu: 0.0.40
codegen_flags: <defaults>
</compile_context>

<pallas_src>
import functools
import math

import jax
import jax.numpy as jnp
from jax.experimental import pallas as pl
from jax.experimental.pallas import tpu as pltpu

LANES = 128      # TPU lane width; slab / hidden activations carried lane-dense
SUBLANES = 8


def _round_up(x, m):
    return (x + m - 1) // m * m


def _param_layout(num_inputs, h, num_outputs):
    """Row offsets of each parameter block inside the packed slab.

    W1 occupies num_inputs rows (rounded to a sublane tile); W2 and W3 are
    padded to full 128-row blocks so the kernel can feed them straight to the
    MXU without any in-kernel padding copy.  Biases each take one 8-row tile.
    """
    w1_off = 0
    b1_off = w1_off + _round_up(num_inputs, SUBLANES)
    w2_off = b1_off + SUBLANES
    b2_off = w2_off + LANES              # full 128x128 MXU block for W2
    w3_off = b2_off + SUBLANES
    b3_off = w3_off + LANES              # full 128x128 MXU block for W3
    rows = b3_off + SUBLANES
    return w1_off, b1_off, w2_off, b2_off, w3_off, b3_off, rows


def pack_actor_params(params):
    """Pack (w1,b1,w2,b2,w3,b3) into one lane-dense f32 slab (built once)."""
    w1, b1, w2, b2, w3, b3 = params
    num_inputs, h = w1.shape
    num_outputs = w3.shape[1]
    assert max(num_inputs, h, num_outputs) <= LANES, "layout assumes dims <= 128"
    w1o, b1o, w2o, b2o, w3o, b3o, rows = _param_layout(num_inputs, h, num_outputs)
    slab = jnp.zeros((rows, LANES), jnp.float32)
    slab = slab.at[w1o:w1o + num_inputs, :h].set(w1.astype(jnp.float32))
    slab = slab.at[b1o, :h].set(b1.reshape(-1).astype(jnp.float32))
    slab = slab.at[w2o:w2o + h, :h].set(w2.astype(jnp.float32))
    slab = slab.at[b2o, :h].set(b2.reshape(-1).astype(jnp.float32))
    slab = slab.at[w3o:w3o + h, :num_outputs].set(w3.astype(jnp.float32))
    slab = slab.at[b3o, :num_outputs].set(b3.reshape(-1).astype(jnp.float32))
    return slab, (num_inputs, h, num_outputs)


def _actor_kernel(x_ref, p_ref, out_ref, *, num_inputs, h, num_outputs,
                  layout, use_mxu):
    w1o, b1o, w2o, b2o, w3o, b3o, _ = layout
    tile_b = x_ref.shape[0]

    x = x_ref[...]                                  # [tile_b, num_inputs]

    def vpu_layer(inp, w_off, b_off, k_dim):
        # VPU outer-product accumulation:
        #   out[b, :] = bias + sum_k inp[b, k] * W[k, :]
        # Split into 2 partial accumulators to shorten the serial dep chain;
        # bias added once at the end via an implicit [1,128] broadcast.
        n_parts = 2 if k_dim >= 2 else 1
        parts = []
        for s in range(n_parts):
            acc = inp[:, s:s + 1] * p_ref[w_off + s:w_off + s + 1, :]
            for k in range(s + n_parts, k_dim, n_parts):
                acc = acc + inp[:, k:k + 1] * p_ref[w_off + k:w_off + k + 1, :]
            parts.append(acc)
        acc = parts[0]
        for extra in parts[1:]:
            acc = acc + extra
        return acc + p_ref[b_off:b_off + 1, :]      # [tile_b, 128]

    # Layer 1: K = num_inputs (tiny, e.g. 4) -> always VPU outer product.
    h1 = jnp.maximum(vpu_layer(x, w1o, b1o, num_inputs), 0.0)

    if use_mxu:
        # Layers 2 and 3 on the MXU against zero-padded [128,128] weight
        # blocks (padded rows/lanes are zero, so the padding contributes 0).
        w2 = p_ref[w2o:w2o + LANES, :]
        w3 = p_ref[w3o:w3o + LANES, :]
        h2 = jnp.maximum(
            jnp.dot(h1, w2, preferred_element_type=jnp.float32)
            + p_ref[b2o:b2o + 1, :], 0.0)
        logits = (jnp.dot(h2, w3, preferred_element_type=jnp.float32)
                  + p_ref[b3o:b3o + 1, :])
    else:
        # Tiny-tile latency path: everything on the VPU (overhead-bound anyway).
        h2 = jnp.maximum(vpu_layer(h1, w2o, b2o, h), 0.0)
        logits = vpu_layer(h2, w3o, b3o, h)          # [tile_b, 128]

    # Numerically-stable softmax over the first `num_outputs` lanes; padded
    # lanes are masked so their exp underflows to 0.  Exact normalization.
    lane = jax.lax.broadcasted_iota(jnp.int32, (tile_b, LANES), 1)
    logits = jnp.where(lane < num_outputs, logits, jnp.float32(-1e30))
    m = jnp.max(logits, axis=1, keepdims=True)
    e = jnp.exp(logits - m)
    s = jnp.sum(e, axis=1, keepdims=True)
    out_ref[...] = e[:, :num_outputs] / s            # narrow [tile_b, n_out] store


def actor_forward(x, packed_slab, dims):
    """Actor forward pass. Returns probs of shape [B, num_outputs]."""
    num_inputs, h, num_outputs = dims
    B = x.shape[0]
    layout = _param_layout(num_inputs, h, num_outputs)
    slab_rows = layout[-1]

    if B <= 128:
        # Latency path: single full-extent tile, no padding (block dims equal
        # to the full array dims are exempt from the (8,128) rule).
        tile_b = B
        b_pad = B
    else:
        # Throughput path: tile up to 512 rows, and always >= 2 grid steps so
        # the "parallel" batch axis can use both TensorCores on v7x.
        tile_b = min(512, _round_up((B + 1) // 2, SUBLANES))
        b_pad = _round_up(B, tile_b)
        if b_pad != B:
            x = jnp.pad(x, ((0, b_pad - B), (0, 0)))
    grid = (b_pad // tile_b,)
    use_mxu = tile_b >= 64

    kernel = functools.partial(
        _actor_kernel,
        num_inputs=num_inputs, h=h, num_outputs=num_outputs,
        layout=layout, use_mxu=use_mxu,
    )

    out = pl.pallas_call(
        kernel,
        out_shape=jax.ShapeDtypeStruct((b_pad, num_outputs), jnp.float32),
        grid_spec=pltpu.PrefetchScalarGridSpec(
            num_scalar_prefetch=0,
            grid=grid,
            in_specs=[
                # activations: tiled over the batch grid axis
                pl.BlockSpec((tile_b, num_inputs), lambda i: (i, 0)),
                # packed params: same block every step -> one DMA, VMEM-resident
                pl.BlockSpec((slab_rows, LANES), lambda i: (0, 0)),
            ],
            out_specs=pl.BlockSpec((tile_b, num_outputs), lambda i: (i, 0)),
        ),
        compiler_params=pltpu.CompilerParams(
            dimension_semantics=("parallel",),
        ),
    )(x, packed_slab)

    return out if b_pad == B else out[:B]


def init_linear(key, fan_in, fan_out):
    """Deterministic PyTorch-nn.Linear-style init: U(-1/sqrt(fan_in), +...)."""
    kw, kb = jax.random.split(key)
    bound = 1.0 / math.sqrt(fan_in)
    # stored transposed: [fan_in, fan_out]
    w = jax.random.uniform(kw, (fan_in, fan_out), jnp.float32, -bound, bound)
    b = jax.random.uniform(kb, (1, fan_out), jnp.float32, -bound, bound)
    return w, b


def make_actor_params(key, num_inputs, num_outputs, hidden_size, reduce_factor):
    h = hidden_size // reduce_factor
    k1, k2, k3 = jax.random.split(key, 3)
    w1, b1 = init_linear(k1, num_inputs, h)
    w2, b2 = init_linear(k2, h, h)
    w3, b3 = init_linear(k3, h, num_outputs)
    return (w1, b1, w2, b2, w3, b3)


def actor_reference(x, params):
    """Pure-JAX reference of the PyTorch module's forward (probs)."""
    w1, b1, w2, b2, w3, b3 = params
    h1 = jnp.maximum(x @ w1 + b1, 0.0)
    h2 = jnp.maximum(h1 @ w2 + b2, 0.0)
    logits = h2 @ w3 + b3
    return jax.nn.softmax(logits, axis=1)


# TODO(synk): torch.distributions.Categorical has no kernel equivalent; the
# returned `probs` matrix fully parameterizes it (sampling/log_prob stay in JAX).

if __name__ == "__main__":
    # Config implied by a2c_env_param + CartPole-v0:
    #   num_envs=2 (batch), obs dim=4, actions=2, hidden_size=64, reduce_factor=4
    num_envs = 2
    num_inputs = 4
    num_outputs = 2
    hidden_size = 64
    reduce_factor = 4

    key = jax.random.PRNGKey(0)
    kx, kx_big, kp = jax.random.split(key, 3)

    params = make_actor_params(kp, num_inputs, num_outputs, hidden_size, reduce_factor)
    slab, dims = pack_actor_params(params)          # built once outside the kernel

    # --- small-batch latency path (the actual A2C config, B=2) ---
    x = jax.random.normal(kx, (num_envs, num_inputs), jnp.float32)
    probs = jax.block_until_ready(actor_forward(x, slab, dims))
    assert probs.shape == (num_envs, num_outputs)
    ref = actor_reference(x, params)
    assert bool(jnp.all(jnp.abs(probs - ref) < 1e-4))
    assert bool(jnp.all(jnp.abs(jnp.sum(probs, axis=1) - 1.0) < 1e-5))

    # --- large-batch throughput path (MXU layers, >=2 grid steps, batch pad) ---
    Bb = 300
    xb = jax.random.normal(kx_big, (Bb, num_inputs), jnp.float32)
    probs_b = jax.block_until_ready(actor_forward(xb, slab, dims))
    assert probs_b.shape == (Bb, num_outputs)
    ref_b = actor_reference(xb, params)
    assert bool(jnp.all(jnp.abs(probs_b - ref_b) < 1e-4))
    assert bool(jnp.all(jnp.abs(jnp.sum(probs_b, axis=1) - 1.0) < 1e-5))

    print("KERNEL_OK")
</pallas_src>

<mosaic_0001>
module attributes {stable_mosaic.version = 11 : i64} {
  func.func @_actor_kernel(%arg0: i32, %arg1: memref<2x4xf32, #tpu.memory_space<vmem>>, %arg2: memref<288x128xf32, #tpu.memory_space<vmem>>, %arg3: memref<2x2xf32, #tpu.memory_space<vmem>>) attributes {dimension_semantics = [#tpu.dimension_semantics<parallel>], iteration_bounds = array<i64: 1>, scalar_prefetch = 0 : i64, scratch_operands = 0 : i64, tpu.core_type = #tpu.core_type<tc>, window_params = [{transform_indices = @transform_0, window_bounds = array<i64: 2, 4>}, {pipeline_mode = #tpu.pipeline_mode<synchronous>, transform_indices = @transform_1, window_bounds = array<i64: 288, 128>}, {transform_indices = @transform_2, window_bounds = array<i64: 2, 2>}]} {
    %c0 = arith.constant 0 : index
    %c0_0 = arith.constant 0 : index
    %0 = vector.load %arg1[%c0, %c0_0] : memref<2x4xf32, #tpu.memory_space<vmem>>, vector<2x4xf32>
    %1 = vector.extract_strided_slice %0 {offsets = [0, 0], sizes = [2, 1], strides = [1, 1]} : vector<2x4xf32> to vector<2x1xf32>
    %c0_1 = arith.constant 0 : index
    %c0_2 = arith.constant 0 : index
    %2 = vector.load %arg2[%c0_1, %c0_2] : memref<288x128xf32, #tpu.memory_space<vmem>>, vector<1x128xf32>
    %3 = vector.broadcast %1 : vector<2x1xf32> to vector<2x128xf32>
    %4 = vector.broadcast %2 : vector<1x128xf32> to vector<2x128xf32>
    %5 = arith.mulf %3, %4 : vector<2x128xf32>
    %6 = vector.extract_strided_slice %0 {offsets = [0, 2], sizes = [2, 1], strides = [1, 1]} : vector<2x4xf32> to vector<2x1xf32>
    %c2 = arith.constant 2 : index
    %c0_3 = arith.constant 0 : index
    %7 = vector.load %arg2[%c2, %c0_3] : memref<288x128xf32, #tpu.memory_space<vmem>>, vector<1x128xf32>
    %8 = vector.broadcast %6 : vector<2x1xf32> to vector<2x128xf32>
    %9 = vector.broadcast %7 : vector<1x128xf32> to vector<2x128xf32>
    %10 = arith.mulf %8, %9 : vector<2x128xf32>
    %11 = arith.addf %5, %10 : vector<2x128xf32>
    %12 = vector.extract_strided_slice %0 {offsets = [0, 1], sizes = [2, 1], strides = [1, 1]} : vector<2x4xf32> to vector<2x1xf32>
    %c1 = arith.constant 1 : index
    %c0_4 = arith.constant 0 : index
    %13 = vector.load %arg2[%c1, %c0_4] : memref<288x128xf32, #tpu.memory_space<vmem>>, vector<1x128xf32>
    %14 = vector.broadcast %12 : vector<2x1xf32> to vector<2x128xf32>
    %15 = vector.broadcast %13 : vector<1x128xf32> to vector<2x128xf32>
    %16 = arith.mulf %14, %15 : vector<2x128xf32>
    %17 = vector.extract_strided_slice %0 {offsets = [0, 3], sizes = [2, 1], strides = [1, 1]} : vector<2x4xf32> to vector<2x1xf32>
    %c3 = arith.constant 3 : index
    %c0_5 = arith.constant 0 : index
    %18 = vector.load %arg2[%c3, %c0_5] : memref<288x128xf32, #tpu.memory_space<vmem>>, vector<1x128xf32>
    %19 = vector.broadcast %17 : vector<2x1xf32> to vector<2x128xf32>
    %20 = vector.broadcast %18 : vector<1x128xf32> to vector<2x128xf32>
    %21 = arith.mulf %19, %20 : vector<2x128xf32>
    %22 = arith.addf %16, %21 : vector<2x128xf32>
    %23 = arith.addf %11, %22 : vector<2x128xf32>
    %c8 = arith.constant 8 : index
    %c0_6 = arith.constant 0 : index
    %24 = vector.load %arg2[%c8, %c0_6] : memref<288x128xf32, #tpu.memory_space<vmem>>, vector<1x128xf32>
    %25 = vector.broadcast %24 : vector<1x128xf32> to vector<2x128xf32>
    %26 = arith.addf %23, %25 : vector<2x128xf32>
    %cst = arith.constant 0.000000e+00 : f32
    %27 = vector.broadcast %cst : f32 to vector<2x128xf32>
    %28 = arith.maximumf %26, %27 : vector<2x128xf32>
    %29 = vector.extract_strided_slice %28 {offsets = [0, 0], sizes = [2, 1], strides = [1, 1]} : vector<2x128xf32> to vector<2x1xf32>
    %c16 = arith.constant 16 : index
    %c0_7 = arith.constant 0 : index
    %30 = vector.load %arg2[%c16, %c0_7] : memref<288x128xf32, #tpu.memory_space<vmem>>, vector<1x128xf32>
    %31 = vector.broadcast %29 : vector<2x1xf32> to vector<2x128xf32>
    %32 = vector.broadcast %30 : vector<1x128xf32> to vector<2x128xf32>
    %33 = arith.mulf %31, %32 : vector<2x128xf32>
    %34 = vector.extract_strided_slice %28 {offsets = [0, 2], sizes = [2, 1], strides = [1, 1]} : vector<2x128xf32> to vector<2x1xf32>
    %c18 = arith.constant 18 : index
    %c0_8 = arith.constant 0 : index
    %35 = vector.load %arg2[%c18, %c0_8] : memref<288x128xf32, #tpu.memory_space<vmem>>, vector<1x128xf32>
    %36 = vector.broadcast %34 : vector<2x1xf32> to vector<2x128xf32>
    %37 = vector.broadcast %35 : vector<1x128xf32> to vector<2x128xf32>
    %38 = arith.mulf %36, %37 : vector<2x128xf32>
    %39 = arith.addf %33, %38 : vector<2x128xf32>
    %40 = vector.extract_strided_slice %28 {offsets = [0, 4], sizes = [2, 1], strides = [1, 1]} : vector<2x128xf32> to vector<2x1xf32>
    %c20 = arith.constant 20 : index
    %c0_9 = arith.constant 0 : index
    %41 = vector.load %arg2[%c20, %c0_9] : memref<288x128xf32, #tpu.memory_space<vmem>>, vector<1x128xf32>
    %42 = vector.broadcast %40 : vector<2x1xf32> to vector<2x128xf32>
    %43 = vector.broadcast %41 : vector<1x128xf32> to vector<2x128xf32>
    %44 = arith.mulf %42, %43 : vector<2x128xf32>
    %45 = arith.addf %39, %44 : vector<2x128xf32>
    %46 = vector.extract_strided_slice %28 {offsets = [0, 6], sizes = [2, 1], strides = [1, 1]} : vector<2x128xf32> to vector<2x1xf32>
    %c22 = arith.constant 22 : index
    %c0_10 = arith.constant 0 : index
    %47 = vector.load %arg2[%c22, %c0_10] : memref<288x128xf32, #tpu.memory_space<vmem>>, vector<1x128xf32>
    %48 = vector.broadcast %46 : vector<2x1xf32> to vector<2x128xf32>
    %49 = vector.broadcast %47 : vector<1x128xf32> to vector<2x128xf32>
    %50 = arith.mulf %48, %49 : vector<2x128xf32>
    %51 = arith.addf %45, %50 : vector<2x128xf32>
    %52 = vector.extract_strided_slice %28 {offsets = [0, 8], sizes = [2, 1], strides = [1, 1]} : vector<2x128xf32> to vector<2x1xf32>
    %c24 = arith.constant 24 : index
    %c0_11 = arith.constant 0 : index
    %53 = vector.load %arg2[%c24, %c0_11] : memref<288x128xf32, #tpu.memory_space<vmem>>, vector<1x128xf32>
    %54 = vector.broadcast %52 : vector<2x1xf32> to vector<2x128xf32>
    %55 = vector.broadcast %53 : vector<1x128xf32> to vector<2x128xf32>
    %56 = arith.mulf %54, %55 : vector<2x128xf32>
    %57 = arith.addf %51, %56 : vector<2x128xf32>
    %58 = vector.extract_strided_slice %28 {offsets = [0, 10], sizes = [2, 1], strides = [1, 1]} : vector<2x128xf32> to vector<2x1xf32>
    %c26 = arith.constant 26 : index
    %c0_12 = arith.constant 0 : index
    %59 = vector.load %arg2[%c26, %c0_12] : memref<288x128xf32, #tpu.memory_space<vmem>>, vector<1x128xf32>
    %60 = vector.broadcast %58 : vector<2x1xf32> to vector<2x128xf32>
    %61 = vector.broadcast %59 : vector<1x128xf32> to vector<2x128xf32>
    %62 = arith.mulf %60, %61 : vector<2x128xf32>
    %63 = arith.addf %57, %62 : vector<2x128xf32>
    %64 = vector.extract_strided_slice %28 {offsets = [0, 12], sizes = [2, 1], strides = [1, 1]} : vector<2x128xf32> to vector<2x1xf32>
    %c28 = arith.constant 28 : index
    %c0_13 = arith.constant 0 : index
    %65 = vector.load %arg2[%c28, %c0_13] : memref<288x128xf32, #tpu.memory_space<vmem>>, vector<1x128xf32>
    %66 = vector.broadcast %64 : vector<2x1xf32> to vector<2x128xf32>
    %67 = vector.broadcast %65 : vector<1x128xf32> to vector<2x128xf32>
    %68 = arith.mulf %66, %67 : vector<2x128xf32>
    %69 = arith.addf %63, %68 : vector<2x128xf32>
    %70 = vector.extract_strided_slice %28 {offsets = [0, 14], sizes = [2, 1], strides = [1, 1]} : vector<2x128xf32> to vector<2x1xf32>
    %c30 = arith.constant 30 : index
    %c0_14 = arith.constant 0 : index
    %71 = vector.load %arg2[%c30, %c0_14] : memref<288x128xf32, #tpu.memory_space<vmem>>, vector<1x128xf32>
    %72 = vector.broadcast %70 : vector<2x1xf32> to vector<2x128xf32>
    %73 = vector.broadcast %71 : vector<1x128xf32> to vector<2x128xf32>
    %74 = arith.mulf %72, %73 : vector<2x128xf32>
    %75 = arith.addf %69, %74 : vector<2x128xf32>
    %76 = vector.extract_strided_slice %28 {offsets = [0, 1], sizes = [2, 1], strides = [1, 1]} : vector<2x128xf32> to vector<2x1xf32>
    %c17 = arith.constant 17 : index
    %c0_15 = arith.constant 0 : index
    %77 = vector.load %arg2[%c17, %c0_15] : memref<288x128xf32, #tpu.memory_space<vmem>>, vector<1x128xf32>
    %78 = vector.broadcast %76 : vector<2x1xf32> to vector<2x128xf32>
    %79 = vector.broadcast %77 : vector<1x128xf32> to vector<2x128xf32>
    %80 = arith.mulf %78, %79 : vector<2x128xf32>
    %81 = vector.extract_strided_slice %28 {offsets = [0, 3], sizes = [2, 1], strides = [1, 1]} : vector<2x128xf32> to vector<2x1xf32>
    %c19 = arith.constant 19 : index
    %c0_16 = arith.constant 0 : index
    %82 = vector.load %arg2[%c19, %c0_16] : memref<288x128xf32, #tpu.memory_space<vmem>>, vector<1x128xf32>
    %83 = vector.broadcast %81 : vector<2x1xf32> to vector<2x128xf32>
    %84 = vector.broadcast %82 : vector<1x128xf32> to vector<2x128xf32>
    %85 = arith.mulf %83, %84 : vector<2x128xf32>
    %86 = arith.addf %80, %85 : vector<2x128xf32>
    %87 = vector.extract_strided_slice %28 {offsets = [0, 5], sizes = [2, 1], strides = [1, 1]} : vector<2x128xf32> to vector<2x1xf32>
    %c21 = arith.constant 21 : index
    %c0_17 = arith.constant 0 : index
    %88 = vector.load %arg2[%c21, %c0_17] : memref<288x128xf32, #tpu.memory_space<vmem>>, vector<1x128xf32>
    %89 = vector.broadcast %87 : vector<2x1xf32> to vector<2x128xf32>
    %90 = vector.broadcast %88 : vector<1x128xf32> to vector<2x128xf32>
    %91 = arith.mulf %89, %90 : vector<2x128xf32>
    %92 = arith.addf %86, %91 : vector<2x128xf32>
    %93 = vector.extract_strided_slice %28 {offsets = [0, 7], sizes = [2, 1], strides = [1, 1]} : vector<2x128xf32> to vector<2x1xf32>
    %c23 = arith.constant 23 : index
    %c0_18 = arith.constant 0 : index
    %94 = vector.load %arg2[%c23, %c0_18] : memref<288x128xf32, #tpu.memory_space<vmem>>, vector<1x128xf32>
    %95 = vector.broadcast %93 : vector<2x1xf32> to vector<2x128xf32>
    %96 = vector.broadcast %94 : vector<1x128xf32> to vector<2x128xf32>
    %97 = arith.mulf %95, %96 : vector<2x128xf32>
    %98 = arith.addf %92, %97 : vector<2x128xf32>
    %99 = vector.extract_strided_slice %28 {offsets = [0, 9], sizes = [2, 1], strides = [1, 1]} : vector<2x128xf32> to vector<2x1xf32>
    %c25 = arith.constant 25 : index
    %c0_19 = arith.constant 0 : index
    %100 = vector.load %arg2[%c25, %c0_19] : memref<288x128xf32, #tpu.memory_space<vmem>>, vector<1x128xf32>
    %101 = vector.broadcast %99 : vector<2x1xf32> to vector<2x128xf32>
    %102 = vector.broadcast %100 : vector<1x128xf32> to vector<2x128xf32>
    %103 = arith.mulf %101, %102 : vector<2x128xf32>
    %104 = arith.addf %98, %103 : vector<2x128xf32>
    %105 = vector.extract_strided_slice %28 {offsets = [0, 11], sizes = [2, 1], strides = [1, 1]} : vector<2x128xf32> to vector<2x1xf32>
    %c27 = arith.constant 27 : index
    %c0_20 = arith.constant 0 : index
    %106 = vector.load %arg2[%c27, %c0_20] : memref<288x128xf32, #tpu.memory_space<vmem>>, vector<1x128xf32>
    %107 = vector.broadcast %105 : vector<2x1xf32> to vector<2x128xf32>
    %108 = vector.broadcast %106 : vector<1x128xf32> to vector<2x128xf32>
    %109 = arith.mulf %107, %108 : vector<2x128xf32>
    %110 = arith.addf %104, %109 : vector<2x128xf32>
    %111 = vector.extract_strided_slice %28 {offsets = [0, 13], sizes = [2, 1], strides = [1, 1]} : vector<2x128xf32> to vector<2x1xf32>
    %c29 = arith.constant 29 : index
    %c0_21 = arith.constant 0 : index
    %112 = vector.load %arg2[%c29, %c0_21] : memref<288x128xf32, #tpu.memory_space<vmem>>, vector<1x128xf32>
    %113 = vector.broadcast %111 : vector<2x1xf32> to vector<2x128xf32>
    %114 = vector.broadcast %112 : vector<1x128xf32> to vector<2x128xf32>
    %115 = arith.mulf %113, %114 : vector<2x128xf32>
    %116 = arith.addf %110, %115 : vector<2x128xf32>
    %117 = vector.extract_strided_slice %28 {offsets = [0, 15], sizes = [2, 1], strides = [1, 1]} : vector<2x128xf32> to vector<2x1xf32>
    %c31 = arith.constant 31 : index
    %c0_22 = arith.constant 0 : index
    %118 = vector.load %arg2[%c31, %c0_22] : memref<288x128xf32, #tpu.memory_space<vmem>>, vector<1x128xf32>
    %119 = vector.broadcast %117 : vector<2x1xf32> to vector<2x128xf32>
    %120 = vector.broadcast %118 : vector<1x128xf32> to vector<2x128xf32>
    %121 = arith.mulf %119, %120 : vector<2x128xf32>
    %122 = arith.addf %116, %121 : vector<2x128xf32>
    %123 = arith.addf %75, %122 : vector<2x128xf32>
    %c144 = arith.constant 144 : index
    %c0_23 = arith.constant 0 : index
    %124 = vector.load %arg2[%c144, %c0_23] : memref<288x128xf32, #tpu.memory_space<vmem>>, vector<1x128xf32>
    %125 = vector.broadcast %124 : vector<1x128xf32> to vector<2x128xf32>
    %126 = arith.addf %123, %125 : vector<2x128xf32>
    %cst_24 = arith.constant 0.000000e+00 : f32
    %127 = vector.broadcast %cst_24 : f32 to vector<2x128xf32>
    %128 = arith.maximumf %126, %127 : vector<2x128xf32>
    %129 = vector.extract_strided_slice %128 {offsets = [0, 0], sizes = [2, 1], strides = [1, 1]} : vector<2x128xf32> to vector<2x1xf32>
    %c152 = arith.constant 152 : index
    %c0_25 = arith.constant 0 : index
    %130 = vector.load %arg2[%c152, %c0_25] : memref<288x128xf32, #tpu.memory_space<vmem>>, vector<1x128xf32>
    %131 = vector.broadcast %129 : vector<2x1xf32> to vector<2x128xf32>
    %132 = vector.broadcast %130 : vector<1x128xf32> to vector<2x128xf32>
    %133 = arith.mulf %131, %132 : vector<2x128xf32>
    %134 = vector.extract_strided_slice %128 {offsets = [0, 2], sizes = [2, 1], strides = [1, 1]} : vector<2x128xf32> to vector<2x1xf32>
    %c154 = arith.constant 154 : index
    %c0_26 = arith.constant 0 : index
    %135 = vector.load %arg2[%c154, %c0_26] : memref<288x128xf32, #tpu.memory_space<vmem>>, vector<1x128xf32>
    %136 = vector.broadcast %134 : vector<2x1xf32> to vector<2x128xf32>
    %137 = vector.broadcast %135 : vector<1x128xf32> to vector<2x128xf32>
    %138 = arith.mulf %136, %137 : vector<2x128xf32>
    %139 = arith.addf %133, %138 : vector<2x128xf32>
    %140 = vector.extract_strided_slice %128 {offsets = [0, 4], sizes = [2, 1], strides = [1, 1]} : vector<2x128xf32> to vector<2x1xf32>
    %c156 = arith.constant 156 : index
    %c0_27 = arith.constant 0 : index
    %141 = vector.load %arg2[%c156, %c0_27] : memref<288x128xf32, #tpu.memory_space<vmem>>, vector<1x128xf32>
    %142 = vector.broadcast %140 : vector<2x1xf32> to vector<2x128xf32>
    %143 = vector.broadcast %141 : vector<1x128xf32> to vector<2x128xf32>
    %144 = arith.mulf %142, %143 : vector<2x128xf32>
    %145 = arith.addf %139, %144 : vector<2x128xf32>
    %146 = vector.extract_strided_slice %128 {offsets = [0, 6], sizes = [2, 1], strides = [1, 1]} : vector<2x128xf32> to vector<2x1xf32>
    %c158 = arith.constant 158 : index
    %c0_28 = arith.constant 0 : index
    %147 = vector.load %arg2[%c158, %c0_28] : memref<288x128xf32, #tpu.memory_space<vmem>>, vector<1x128xf32>
    %148 = vector.broadcast %146 : vector<2x1xf32> to vector<2x128xf32>
    %149 = vector.broadcast %147 : vector<1x128xf32> to vector<2x128xf32>
    %150 = arith.mulf %148, %149 : vector<2x128xf32>
    %151 = arith.addf %145, %150 : vector<2x128xf32>
    %152 = vector.extract_strided_slice %128 {offsets = [0, 8], sizes = [2, 1], strides = [1, 1]} : vector<2x128xf32> to vector<2x1xf32>
    %c160 = arith.constant 160 : index
    %c0_29 = arith.constant 0 : index
    %153 = vector.load %arg2[%c160, %c0_29] : memref<288x128xf32, #tpu.memory_space<vmem>>, vector<1x128xf32>
    %154 = vector.broadcast %152 : vector<2x1xf32> to vector<2x128xf32>
    %155 = vector.broadcast %153 : vector<1x128xf32> to vector<2x128xf32>
    %156 = arith.mulf %154, %155 : vector<2x128xf32>
    %157 = arith.addf %151, %156 : vector<2x128xf32>
    %158 = vector.extract_strided_slice %128 {offsets = [0, 10], sizes = [2, 1], strides = [1, 1]} : vector<2x128xf32> to vector<2x1xf32>
    %c162 = arith.constant 162 : index
    %c0_30 = arith.constant 0 : index
    %159 = vector.load %arg2[%c162, %c0_30] : memref<288x128xf32, #tpu.memory_space<vmem>>, vector<1x128xf32>
    %160 = vector.broadcast %158 : vector<2x1xf32> to vector<2x128xf32>
    %161 = vector.broadcast %159 : vector<1x128xf32> to vector<2x128xf32>
    %162 = arith.mulf %160, %161 : vector<2x128xf32>
    %163 = arith.addf %157, %162 : vector<2x128xf32>
    %164 = vector.extract_strided_slice %128 {offsets = [0, 12], sizes = [2, 1], strides = [1, 1]} : vector<2x128xf32> to vector<2x1xf32>
    %c164 = arith.constant 164 : index
    %c0_31 = arith.constant 0 : index
    %165 = vector.load %arg2[%c164, %c0_31] : memref<288x128xf32, #tpu.memory_space<vmem>>, vector<1x128xf32>
    %166 = vector.broadcast %164 : vector<2x1xf32> to vector<2x128xf32>
    %167 = vector.broadcast %165 : vector<1x128xf32> to vector<2x128xf32>
    %168 = arith.mulf %166, %167 : vector<2x128xf32>
    %169 = arith.addf %163, %168 : vector<2x128xf32>
    %170 = vector.extract_strided_slice %128 {offsets = [0, 14], sizes = [2, 1], strides = [1, 1]} : vector<2x128xf32> to vector<2x1xf32>
    %c166 = arith.constant 166 : index
    %c0_32 = arith.constant 0 : index
    %171 = vector.load %arg2[%c166, %c0_32] : memref<288x128xf32, #tpu.memory_space<vmem>>, vector<1x128xf32>
    %172 = vector.broadcast %170 : vector<2x1xf32> to vector<2x128xf32>
    %173 = vector.broadcast %171 : vector<1x128xf32> to vector<2x128xf32>
    %174 = arith.mulf %172, %173 : vector<2x128xf32>
    %175 = arith.addf %169, %174 : vector<2x128xf32>
    %176 = vector.extract_strided_slice %128 {offsets = [0, 1], sizes = [2, 1], strides = [1, 1]} : vector<2x128xf32> to vector<2x1xf32>
    %c153 = arith.constant 153 : index
    %c0_33 = arith.constant 0 : index
    %177 = vector.load %arg2[%c153, %c0_33] : memref<288x128xf32, #tpu.memory_space<vmem>>, vector<1x128xf32>
    %178 = vector.broadcast %176 : vector<2x1xf32> to vector<2x128xf32>
    %179 = vector.broadcast %177 : vector<1x128xf32> to vector<2x128xf32>
    %180 = arith.mulf %178, %179 : vector<2x128xf32>
    %181 = vector.extract_strided_slice %128 {offsets = [0, 3], sizes = [2, 1], strides = [1, 1]} : vector<2x128xf32> to vector<2x1xf32>
    %c155 = arith.constant 155 : index
    %c0_34 = arith.constant 0 : index
    %182 = vector.load %arg2[%c155, %c0_34] : memref<288x128xf32, #tpu.memory_space<vmem>>, vector<1x128xf32>
    %183 = vector.broadcast %181 : vector<2x1xf32> to vector<2x128xf32>
    %184 = vector.broadcast %182 : vector<1x128xf32> to vector<2x128xf32>
    %185 = arith.mulf %183, %184 : vector<2x128xf32>
    %186 = arith.addf %180, %185 : vector<2x128xf32>
    %187 = vector.extract_strided_slice %128 {offsets = [0, 5], sizes = [2, 1], strides = [1, 1]} : vector<2x128xf32> to vector<2x1xf32>
    %c157 = arith.constant 157 : index
    %c0_35 = arith.constant 0 : index
    %188 = vector.load %arg2[%c157, %c0_35] : memref<288x128xf32, #tpu.memory_space<vmem>>, vector<1x128xf32>
    %189 = vector.broadcast %187 : vector<2x1xf32> to vector<2x128xf32>
    %190 = vector.broadcast %188 : vector<1x128xf32> to vector<2x128xf32>
    %191 = arith.mulf %189, %190 : vector<2x128xf32>
    %192 = arith.addf %186, %191 : vector<2x128xf32>
    %193 = vector.extract_strided_slice %128 {offsets = [0, 7], sizes = [2, 1], strides = [1, 1]} : vector<2x128xf32> to vector<2x1xf32>
    %c159 = arith.constant 159 : index
    %c0_36 = arith.constant 0 : index
    %194 = vector.load %arg2[%c159, %c0_36] : memref<288x128xf32, #tpu.memory_space<vmem>>, vector<1x128xf32>
    %195 = vector.broadcast %193 : vector<2x1xf32> to vector<2x128xf32>
    %196 = vector.broadcast %194 : vector<1x128xf32> to vector<2x128xf32>
    %197 = arith.mulf %195, %196 : vector<2x128xf32>
    %198 = arith.addf %192, %197 : vector<2x128xf32>
    %199 = vector.extract_strided_slice %128 {offsets = [0, 9], sizes = [2, 1], strides = [1, 1]} : vector<2x128xf32> to vector<2x1xf32>
    %c161 = arith.constant 161 : index
    %c0_37 = arith.constant 0 : index
    %200 = vector.load %arg2[%c161, %c0_37] : memref<288x128xf32, #tpu.memory_space<vmem>>, vector<1x128xf32>
    %201 = vector.broadcast %199 : vector<2x1xf32> to vector<2x128xf32>
    %202 = vector.broadcast %200 : vector<1x128xf32> to vector<2x128xf32>
    %203 = arith.mulf %201, %202 : vector<2x128xf32>
    %204 = arith.addf %198, %203 : vector<2x128xf32>
    %205 = vector.extract_strided_slice %128 {offsets = [0, 11], sizes = [2, 1], strides = [1, 1]} : vector<2x128xf32> to vector<2x1xf32>
    %c163 = arith.constant 163 : index
    %c0_38 = arith.constant 0 : index
    %206 = vector.load %arg2[%c163, %c0_38] : memref<288x128xf32, #tpu.memory_space<vmem>>, vector<1x128xf32>
    %207 = vector.broadcast %205 : vector<2x1xf32> to vector<2x128xf32>
    %208 = vector.broadcast %206 : vector<1x128xf32> to vector<2x128xf32>
    %209 = arith.mulf %207, %208 : vector<2x128xf32>
    %210 = arith.addf %204, %209 : vector<2x128xf32>
    %211 = vector.extract_strided_slice %128 {offsets = [0, 13], sizes = [2, 1], strides = [1, 1]} : vector<2x128xf32> to vector<2x1xf32>
    %c165 = arith.constant 165 : index
    %c0_39 = arith.constant 0 : index
    %212 = vector.load %arg2[%c165, %c0_39] : memref<288x128xf32, #tpu.memory_space<vmem>>, vector<1x128xf32>
    %213 = vector.broadcast %211 : vector<2x1xf32> to vector<2x128xf32>
    %214 = vector.broadcast %212 : vector<1x128xf32> to vector<2x128xf32>
    %215 = arith.mulf %213, %214 : vector<2x128xf32>
    %216 = arith.addf %210, %215 : vector<2x128xf32>
    %217 = vector.extract_strided_slice %128 {offsets = [0, 15], sizes = [2, 1], strides = [1, 1]} : vector<2x128xf32> to vector<2x1xf32>
    %c167 = arith.constant 167 : index
    %c0_40 = arith.constant 0 : index
    %218 = vector.load %arg2[%c167, %c0_40] : memref<288x128xf32, #tpu.memory_space<vmem>>, vector<1x128xf32>
    %219 = vector.broadcast %217 : vector<2x1xf32> to vector<2x128xf32>
    %220 = vector.broadcast %218 : vector<1x128xf32> to vector<2x128xf32>
    %221 = arith.mulf %219, %220 : vector<2x128xf32>
    %222 = arith.addf %216, %221 : vector<2x128xf32>
    %223 = arith.addf %175, %222 : vector<2x128xf32>
    %c280 = arith.constant 280 : index
    %c0_41 = arith.constant 0 : index
    %224 = vector.load %arg2[%c280, %c0_41] : memref<288x128xf32, #tpu.memory_space<vmem>>, vector<1x128xf32>
    %225 = vector.broadcast %224 : vector<1x128xf32> to vector<2x128xf32>
    %226 = arith.addf %223, %225 : vector<2x128xf32>
    %227 = tpu.iota {dimensions = array<i32: 1>} : vector<2x128xi32>
    %c2_i32 = arith.constant 2 : i32
    %228 = vector.broadcast %c2_i32 : i32 to vector<2x128xi32>
    %229 = arith.cmpi slt, %227, %228 : vector<2x128xi32>
    %cst_42 = arith.constant -1.000000e+30 : f32
    %230 = vector.broadcast %cst_42 : f32 to vector<2x128xf32>
    %231 = arith.select %229, %226, %230 : vector<2x128xi1>, vector<2x128xf32>
    %cst_43 = arith.constant dense<0xFF800000> : vector<2xf32>
    %232 = vector.multi_reduction <maximumf>, %231, %cst_43 [1] : vector<2x128xf32> to vector<2xf32>
    %233 = vector.shape_cast %232 : vector<2xf32> to vector<2x1xf32>
    %234 = vector.broadcast %233 : vector<2x1xf32> to vector<2x128xf32>
    %235 = arith.subf %231, %234 : vector<2x128xf32>
    %236 = math.exp %235 : vector<2x128xf32>
    %cst_44 = arith.constant dense<0.000000e+00> : vector<2xf32>
    %237 = vector.multi_reduction <add>, %236, %cst_44 [1] : vector<2x128xf32> to vector<2xf32>
    %238 = vector.shape_cast %237 : vector<2xf32> to vector<2x1xf32>
    %239 = vector.extract_strided_slice %236 {offsets = [0, 0], sizes = [2, 2], strides = [1, 1]} : vector<2x128xf32> to vector<2x2xf32>
    %240 = vector.broadcast %238 : vector<2x1xf32> to vector<2x2xf32>
    %241 = arith.divf %239, %240 : vector<2x2xf32>
    %c0_45 = arith.constant 0 : index
    %c0_46 = arith.constant 0 : index
    %242 = vector.load %arg3[%c0_45, %c0_46] : memref<2x2xf32, #tpu.memory_space<vmem>>, vector<2x2xf32>
    tpu.vector_store %arg3[%c0_45, %c0_46], %241 {strides = array<i32>} : memref<2x2xf32, #tpu.memory_space<vmem>>, vector<2x2xf32>,
    return
  }
  func.func @transform_0(%arg0: i32) -> (i32, i32) {
    %c0_i32 = arith.constant 0 : i32
    %c0_i32_0 = arith.constant 0 : i32
    return %arg0, %c0_i32 : i32, i32
  }
  func.func @transform_1(%arg0: i32) -> (i32, i32) {
    %c0_i32 = arith.constant 0 : i32
    %c0_i32_0 = arith.constant 0 : i32
    %c0_i32_1 = arith.constant 0 : i32
    return %c0_i32, %c0_i32_0 : i32, i32
  }
  func.func @transform_2(%arg0: i32) -> (i32, i32) {
    %c0_i32 = arith.constant 0 : i32
    %c0_i32_0 = arith.constant 0 : i32
    return %arg0, %c0_i32 : i32, i32
  }
}

</mosaic_0001>

<llo_original>
// kernel: tpu_custom_call.1
$region0: #{tpu_custom_call.1}
  #allocation0 [shape = 'u32[]', space=smem, size = 0x4, offset = 0x4, fixed_abs, tag = 'smem constant byte address 0x4 - core index']
  #allocation1 [shape = 'u32[144,128]{1,0:T(1,128)}', space=vmem, size = 0x12000, scoped, tag = 'internal scratch']
  %s0 = inlined_call_operand.hbm [shape: f32[2,4], index: 0, kind: input, shape index: {}]
  %s1 = inlined_call_operand.hbm [shape: f32[288,128], index: 1, kind: input, shape index: {}]
  %s2 = inlined_call_operand.hbm [shape: f32[2,2], index: 2, kind: output, shape index: {}]
  %s3 = sld [smem:[#allocation0]]
  $region26: #{tpu_custom_call.1} parent=0
    _
  %s5 = ssub.s32 1, %s3
  %s6 = scalar_select 0, %s5, %s3
  $region1: #{tpu_custom_call.1} parent=0
    #allocation2 [shape = 'u8[1024]{0}', space=vmem, size = 0x400, scoped, tag = 'input window, operand 0, single buffered']
    #allocation3 [shape = 's32[1]{0}', space=sflag, size = 0x4, scoped, tag = 'scoped memory for tpu_custom_call.1']
    #allocation4 [shape = 's32[1]{0}', space=sflag, size = 0x4, scoped, tag = 'scoped memory for tpu_custom_call.1']
    #allocation5 [shape = 'u8[147456]{0}', space=vmem, size = 0x24000, scoped, tag = 'input window, operand 1, single buffered']
    #allocation6 [shape = 's32[1]{0}', space=sflag, size = 0x4, scoped, tag = 'scoped memory for tpu_custom_call.1']
    #allocation7 [shape = 'u8[1024]{0}', space=vmem, size = 0x400, scoped, tag = 'output window, operand 0, single buffered']
    %7 = vsyncpa [#allocation3], 0
    %8 = vsyncpa [#allocation6], 0
    %9 = vsyncpa [#allocation4], 0
    // Predicated region
    $region2: #{tpu_custom_call.1} parent=1 // pred_check
      _
    $region3: #{tpu_custom_call.1} parent=1 // pred_check_branch
      %11 = sbr.rel (0) target = $region5
    $region4: #{tpu_custom_call.1} parent=1 // pred_region
      %s13 = ssub.s32 32, 32
      %14 = vsyncadd [#allocation3], %s13
      %s16 = sshll.u32 [#allocation2], 4
      %s17 = int_to_ptr.vmem [resolvable:$true] %s16
      %19 = dma.hbm_to_vmem [thread:$0]  %s0, 32, %s17, [#allocation3]
    $region5: #{tpu_custom_call.1} parent=1 // pred_fallthru
      _
    // Predicated region
    $region6: #{tpu_custom_call.1} parent=1 // pred_check
      _
    $region7: #{tpu_custom_call.1} parent=1 // pred_check_branch
      %21 = sbr.rel (0) target = $region9
    $region8: #{tpu_custom_call.1} parent=1 // pred_region
      %s23 = ssub.s32 4608, 4608
      %24 = vsyncadd [#allocation6], %s23
      %s25 = sshll.u32 [#allocation5], 4
      %s26 = int_to_ptr.vmem [resolvable:$true] %s25
      %31 = dma.hbm_to_vmem [thread:$0]  %s1, 4608, %s26, [#allocation6], 128, 128, 8
    $region9: #{tpu_custom_call.1} parent=1 // pred_fallthru
      _
    // Predicated region
    $region10: #{tpu_custom_call.1} parent=1 // pred_check
      _
    $region11: #{tpu_custom_call.1} parent=1 // pred_check_branch
      %33 = sbr.rel (0) target = $region13
    $region12: #{tpu_custom_call.1} parent=1 // pred_region
      %34 = dma.done [#allocation3], 32
    $region13: #{tpu_custom_call.1} parent=1 // pred_fallthru
      _
    // Predicated region
    $region14: #{tpu_custom_call.1} parent=1 // pred_check
      _
    $region15: #{tpu_custom_call.1} parent=1 // pred_check_branch
      %36 = sbr.rel (0) target = $region17
    $region16: #{tpu_custom_call.1} parent=1 // pred_region
      %37 = dma.done [#allocation6], 4608
    $region17: #{tpu_custom_call.1} parent=1 // pred_fallthru
      _
    %v38 = vld [vmem:[#allocation2] sm:$0x3]
    %v39 = vld [vmem:[#allocation5] sm:$0x1]
    %41 = vset.pattern.permute.xlu0 0
    %42 = vperm.xlu0 %41, %v38
    %v43 = vpop.permute.xlu0 %42
    %v45 = vlaneseq
    %v46 = vshrl.u32 %v45, 7
    %v47 = vsub.s32 0, %v46
    %v48 = vrot.slane %v39, %v47
    %v49 = vmul.f32 %v43, %v48
    %v50 = vld [vmem:[#allocation5 + $0x2] sm:$0x1]
    %51 = vset.pattern.permute.xlu0 2
    %52 = vperm.xlu0 %51, %v38
    %v53 = vpop.permute.xlu0 %52
    %v55 = vlaneseq
    %v56 = vshrl.u32 %v55, 7
    %v57 = vsub.s32 0, %v56
    %v58 = vrot.slane %v50, %v57
    %v59 = vmul.f32 %v53, %v58
    %v60 = vadd.f32 %v49, %v59
    %v61 = vld [vmem:[#allocation5 + $0x1] sm:$0x1]
    %62 = vset.pattern.permute.xlu0 1
    %63 = vperm.xlu0 %62, %v38
    %v64 = vpop.permute.xlu0 %63
    %v66 = vlaneseq
    %v67 = vshrl.u32 %v66, 7
    %v68 = vsub.s32 0, %v67
    %v69 = vrot.slane %v61, %v68
    %v70 = vmul.f32 %v64, %v69
    %v71 = vld [vmem:[#allocation5 + $0x3] sm:$0x1]
    %72 = vset.pattern.permute.xlu0 3
    %73 = vperm.xlu0 %72, %v38
    %v74 = vpop.permute.xlu0 %73
    %v76 = vlaneseq
    %v77 = vshrl.u32 %v76, 7
    %v78 = vsub.s32 0, %v77
    %v79 = vrot.slane %v71, %v78
    %v80 = vmul.f32 %v74, %v79
    %v81 = vadd.f32 %v70, %v80
    %v82 = vadd.f32 %v60, %v81
    %v83 = vld [vmem:[#allocation5 + $0x8] sm:$0x1]
    %v84 = vlaneseq
    %v85 = vshrl.u32 %v84, 7
    %v86 = vsub.s32 0, %v85
    %v87 = vrot.slane %v83, %v86
    %v88 = vadd.f32 %v82, %v87
    %v89 = vmax.f32 %v88, 0.0
    %v90 = vld [vmem:[#allocation5 + $0x10] sm:$0x1]
    %92 = vset.pattern.permute.xlu0 0
    %93 = vperm.xlu0 %92, %v89
    %v94 = vpop.permute.xlu0 %93
    %v96 = vlaneseq
    %v97 = vshrl.u32 %v96, 7
    %v98 = vsub.s32 0, %v97
    %v99 = vrot.slane %v90, %v98
    %v100 = vmul.f32 %v94, %v99
    %v101 = vld [vmem:[#allocation5 + $0x12] sm:$0x1]
    %102 = vset.pattern.permute.xlu0 2
    %103 = vperm.xlu0 %102, %v89
    %v104 = vpop.permute.xlu0 %103
    %v106 = vlaneseq
    %v107 = vshrl.u32 %v106, 7
    %v108 = vsub.s32 0, %v107
    %v109 = vrot.slane %v101, %v108
    %v110 = vmul.f32 %v104, %v109
    %v111 = vadd.f32 %v100, %v110
    %v112 = vld [vmem:[#allocation5 + $0x14] sm:$0x1]
    %113 = vset.pattern.permute.xlu0 4
    %114 = vperm.xlu0 %113, %v89
    %v115 = vpop.permute.xlu0 %114
    %v117 = vlaneseq
    %v118 = vshrl.u32 %v117, 7
    %v119 = vsub.s32 0, %v118
    %v120 = vrot.slane %v112, %v119
    %v121 = vmul.f32 %v115, %v120
    %v122 = vadd.f32 %v111, %v121
    %v123 = vld [vmem:[#allocation5 + $0x16] sm:$0x1]
    %124 = vset.pattern.permute.xlu0 6
    %125 = vperm.xlu0 %124, %v89
    %v126 = vpop.permute.xlu0 %125
    %v128 = vlaneseq
    %v129 = vshrl.u32 %v128, 7
    %v130 = vsub.s32 0, %v129
    %v131 = vrot.slane %v123, %v130
    %v132 = vmul.f32 %v126, %v131
    %v133 = vadd.f32 %v122, %v132
    %v134 = vld [vmem:[#allocation5 + $0x18] sm:$0x1]
    %135 = vset.pattern.permute.xlu0 8
    %136 = vperm.xlu0 %135, %v89
    %v137 = vpop.permute.xlu0 %136
    %v139 = vlaneseq
    %v140 = vshrl.u32 %v139, 7
    %v141 = vsub.s32 0, %v140
    %v142 = vrot.slane %v134, %v141
    %v143 = vmul.f32 %v137, %v142
    %v144 = vadd.f32 %v133, %v143
    %v145 = vld [vmem:[#allocation5 + $0x1a] sm:$0x1]
    %146 = vset.pattern.permute.xlu0 10
    %147 = vperm.xlu0 %146, %v89
    %v148 = vpop.permute.xlu0 %147
    %v150 = vlaneseq
    %v151 = vshrl.u32 %v150, 7
    %v152 = vsub.s32 0, %v151
    %v153 = vrot.slane %v145, %v152
    %v154 = vmul.f32 %v148, %v153
    %v155 = vadd.f32 %v144, %v154
    %v156 = vld [vmem:[#allocation5 + $0x1c] sm:$0x1]
    %157 = vset.pattern.permute.xlu0 12
    %158 = vperm.xlu0 %157, %v89
    %v159 = vpop.permute.xlu0 %158
    %v161 = vlaneseq
    %v162 = vshrl.u32 %v161, 7
    %v163 = vsub.s32 0, %v162
    %v164 = vrot.slane %v156, %v163
    %v165 = vmul.f32 %v159, %v164
    %v166 = vadd.f32 %v155, %v165
    %v167 = vld [vmem:[#allocation5 + $0x1e] sm:$0x1]
    %168 = vset.pattern.permute.xlu0 14
    %169 = vperm.xlu0 %168, %v89
    %v170 = vpop.permute.xlu0 %169
    %v172 = vlaneseq
    %v173 = vshrl.u32 %v172, 7
    %v174 = vsub.s32 0, %v173
    %v175 = vrot.slane %v167, %v174
    %v176 = vmul.f32 %v170, %v175
    %v177 = vadd.f32 %v166, %v176
    %v178 = vld [vmem:[#allocation5 + $0x11] sm:$0x1]
    %179 = vset.pattern.permute.xlu0 1
    %180 = vperm.xlu0 %179, %v89
    %v181 = vpop.permute.xlu0 %180
    %v183 = vlaneseq
    %v184 = vshrl.u32 %v183, 7
    %v185 = vsub.s32 0, %v184
    %v186 = vrot.slane %v178, %v185
    %v187 = vmul.f32 %v181, %v186
    %v188 = vld [vmem:[#allocation5 + $0x13] sm:$0x1]
    %189 = vset.pattern.permute.xlu0 3
    %190 = vperm.xlu0 %189, %v89
    %v191 = vpop.permute.xlu0 %190
    %v193 = vlaneseq
    %v194 = vshrl.u32 %v193, 7
    %v195 = vsub.s32 0, %v194
    %v196 = vrot.slane %v188, %v195
    %v197 = vmul.f32 %v191, %v196
    %v198 = vadd.f32 %v187, %v197
    %v199 = vld [vmem:[#allocation5 + $0x15] sm:$0x1]
    %200 = vset.pattern.permute.xlu0 5
    %201 = vperm.xlu0 %200, %v89
    %v202 = vpop.permute.xlu0 %201
    %v204 = vlaneseq
    %v205 = vshrl.u32 %v204, 7
    %v206 = vsub.s32 0, %v205
    %v207 = vrot.slane %v199, %v206
    %v208 = vmul.f32 %v202, %v207
    %v209 = vadd.f32 %v198, %v208
    %v210 = vld [vmem:[#allocation5 + $0x17] sm:$0x1]
    %211 = vset.pattern.permute.xlu0 7
    %212 = vperm.xlu0 %211, %v89
    %v213 = vpop.permute.xlu0 %212
    %v215 = vlaneseq
    %v216 = vshrl.u32 %v215, 7
    %v217 = vsub.s32 0, %v216
    %v218 = vrot.slane %v210, %v217
    %v219 = vmul.f32 %v213, %v218
    %v220 = vadd.f32 %v209, %v219
    %v221 = vld [vmem:[#allocation5 + $0x19] sm:$0x1]
    %222 = vset.pattern.permute.xlu0 9
    %223 = vperm.xlu0 %222, %v89
    %v224 = vpop.permute.xlu0 %223
    %v226 = vlaneseq
    %v227 = vshrl.u32 %v226, 7
    %v228 = vsub.s32 0, %v227
    %v229 = vrot.slane %v221, %v228
    %v230 = vmul.f32 %v224, %v229
    %v231 = vadd.f32 %v220, %v230
    %v232 = vld [vmem:[#allocation5 + $0x1b] sm:$0x1]
    %233 = vset.pattern.permute.xlu0 11
    %234 = vperm.xlu0 %233, %v89
    %v235 = vpop.permute.xlu0 %234
    %v237 = vlaneseq
    %v238 = vshrl.u32 %v237, 7
    %v239 = vsub.s32 0, %v238
    %v240 = vrot.slane %v232, %v239
    %v241 = vmul.f32 %v235, %v240
    %v242 = vadd.f32 %v231, %v241
    %v243 = vld [vmem:[#allocation5 + $0x1d] sm:$0x1]
    %244 = vset.pattern.permute.xlu0 13
    %245 = vperm.xlu0 %244, %v89
    %v246 = vpop.permute.xlu0 %245
    %v248 = vlaneseq
    %v249 = vshrl.u32 %v248, 7
    %v250 = vsub.s32 0, %v249
    %v251 = vrot.slane %v243, %v250
    %v252 = vmul.f32 %v246, %v251
    %v253 = vadd.f32 %v242, %v252
    %v254 = vld [vmem:[#allocation5 + $0x1f] sm:$0x1]
    %255 = vset.pattern.permute.xlu0 15
    %256 = vperm.xlu0 %255, %v89
    %v257 = vpop.permute.xlu0 %256
    %v259 = vlaneseq
    %v260 = vshrl.u32 %v259, 7
    %v261 = vsub.s32 0, %v260
    %v262 = vrot.slane %v254, %v261
    %v263 = vmul.f32 %v257, %v262
    %v264 = vadd.f32 %v253, %v263
    %v265 = vadd.f32 %v177, %v264
    %v266 = vld [vmem:[#allocation5 + $0x90] sm:$0x1]
    %v267 = vlaneseq
    %v268 = vshrl.u32 %v267, 7
    %v269 = vsub.s32 0, %v268
    %v270 = vrot.slane %v266, %v269
    %v271 = vadd.f32 %v265, %v270
    %v272 = vmax.f32 %v271, 0.0
    %v273 = vld [vmem:[#allocation5 + $0x98] sm:$0x1]
    %275 = vset.pattern.permute.xlu0 0
    %276 = vperm.xlu0 %275, %v272
    %v277 = vpop.permute.xlu0 %276
    %v279 = vlaneseq
    %v280 = vshrl.u32 %v279, 7
    %v281 = vsub.s32 0, %v280
    %v282 = vrot.slane %v273, %v281
    %v283 = vmul.f32 %v277, %v282
    %v284 = vld [vmem:[#allocation5 + $0x9a] sm:$0x1]
    %285 = vset.pattern.permute.xlu0 2
    %286 = vperm.xlu0 %285, %v272
    %v287 = vpop.permute.xlu0 %286
    %v289 = vlaneseq
    %v290 = vshrl.u32 %v289, 7
    %v291 = vsub.s32 0, %v290
    %v292 = vrot.slane %v284, %v291
    %v293 = vmul.f32 %v287, %v292
    %v294 = vadd.f32 %v283, %v293
    %v295 = vld [vmem:[#allocation5 + $0x9c] sm:$0x1]
    %296 = vset.pattern.permute.xlu0 4
    %297 = vperm.xlu0 %296, %v272
    %v298 = vpop.permute.xlu0 %297
    %v300 = vlaneseq
    %v301 = vshrl.u32 %v300, 7
    %v302 = vsub.s32 0, %v301
    %v303 = vrot.slane %v295, %v302
    %v304 = vmul.f32 %v298, %v303
    %v305 = vadd.f32 %v294, %v304
    %v306 = vld [vmem:[#allocation5 + $0x9e] sm:$0x1]
    %307 = vset.pattern.permute.xlu0 6
    %308 = vperm.xlu0 %307, %v272
    %v309 = vpop.permute.xlu0 %308
    %v311 = vlaneseq
    %v312 = vshrl.u32 %v311, 7
    %v313 = vsub.s32 0, %v312
    %v314 = vrot.slane %v306, %v313
    %v315 = vmul.f32 %v309, %v314
    %v316 = vadd.f32 %v305, %v315
    %v317 = vld [vmem:[#allocation5 + $0xa0] sm:$0x1]
    %318 = vset.pattern.permute.xlu0 8
    %319 = vperm.xlu0 %318, %v272
    %v320 = vpop.permute.xlu0 %319
    %v322 = vlaneseq
    %v323 = vshrl.u32 %v322, 7
    %v324 = vsub.s32 0, %v323
    %v325 = vrot.slane %v317, %v324
    %v326 = vmul.f32 %v320, %v325
    %v327 = vadd.f32 %v316, %v326
    %v328 = vld [vmem:[#allocation5 + $0xa2] sm:$0x1]
    %329 = vset.pattern.permute.xlu0 10
    %330 = vperm.xlu0 %329, %v272
    %v331 = vpop.permute.xlu0 %330
    %v333 = vlaneseq
    %v334 = vshrl.u32 %v333, 7
    %v335 = vsub.s32 0, %v334
    %v336 = vrot.slane %v328, %v335
    %v337 = vmul.f32 %v331, %v336
    %v338 = vadd.f32 %v327, %v337
    %v339 = vld [vmem:[#allocation5 + $0xa4] sm:$0x1]
    %340 = vset.pattern.permute.xlu0 12
    %341 = vperm.xlu0 %340, %v272
    %v342 = vpop.permute.xlu0 %341
    %v344 = vlaneseq
    %v345 = vshrl.u32 %v344, 7
    %v346 = vsub.s32 0, %v345
    %v347 = vrot.slane %v339, %v346
    %v348 = vmul.f32 %v342, %v347
    %v349 = vadd.f32 %v338, %v348
    %v350 = vld [vmem:[#allocation5 + $0xa6] sm:$0x1]
    %351 = vset.pattern.permute.xlu0 14
    %352 = vperm.xlu0 %351, %v272
    %v353 = vpop.permute.xlu0 %352
    %v355 = vlaneseq
    %v356 = vshrl.u32 %v355, 7
    %v357 = vsub.s32 0, %v356
    %v358 = vrot.slane %v350, %v357
    %v359 = vmul.f32 %v353, %v358
    %v360 = vadd.f32 %v349, %v359
    %v361 = vld [vmem:[#allocation5 + $0x99] sm:$0x1]
    %362 = vset.pattern.permute.xlu0 1
    %363 = vperm.xlu0 %362, %v272
    %v364 = vpop.permute.xlu0 %363
    %v366 = vlaneseq
    %v367 = vshrl.u32 %v366, 7
    %v368 = vsub.s32 0, %v367
    %v369 = vrot.slane %v361, %v368
    %v370 = vmul.f32 %v364, %v369
    %v371 = vld [vmem:[#allocation5 + $0x9b] sm:$0x1]
    %372 = vset.pattern.permute.xlu0 3
    %373 = vperm.xlu0 %372, %v272
    %v374 = vpop.permute.xlu0 %373
    %v376 = vlaneseq
    %v377 = vshrl.u32 %v376, 7
    %v378 = vsub.s32 0, %v377
    %v379 = vrot.slane %v371, %v378
    %v380 = vmul.f32 %v374, %v379
    %v381 = vadd.f32 %v370, %v380
    %v382 = vld [vmem:[#allocation5 + $0x9d] sm:$0x1]
    %383 = vset.pattern.permute.xlu0 5
    %384 = vperm.xlu0 %383, %v272
    %v385 = vpop.permute.xlu0 %384
    %v387 = vlaneseq
    %v388 = vshrl.u32 %v387, 7
    %v389 = vsub.s32 0, %v388
    %v390 = vrot.slane %v382, %v389
    %v391 = vmul.f32 %v385, %v390
    %v392 = vadd.f32 %v381, %v391
    %v393 = vld [vmem:[#allocation5 + $0x9f] sm:$0x1]
    %394 = vset.pattern.permute.xlu0 7
    %395 = vperm.xlu0 %394, %v272
    %v396 = vpop.permute.xlu0 %395
    %v398 = vlaneseq
    %v399 = vshrl.u32 %v398, 7
    %v400 = vsub.s32 0, %v399
    %v401 = vrot.slane %v393, %v400
    %v402 = vmul.f32 %v396, %v401
    %v403 = vadd.f32 %v392, %v402
    %v404 = vld [vmem:[#allocation5 + $0xa1] sm:$0x1]
    %405 = vset.pattern.permute.xlu0 9
    %406 = vperm.xlu0 %405, %v272
    %v407 = vpop.permute.xlu0 %406
    %v409 = vlaneseq
    %v410 = vshrl.u32 %v409, 7
    %v411 = vsub.s32 0, %v410
    %v412 = vrot.slane %v404, %v411
    %v413 = vmul.f32 %v407, %v412
    %v414 = vadd.f32 %v403, %v413
    %v415 = vld [vmem:[#allocation5 + $0xa3] sm:$0x1]
    %416 = vset.pattern.permute.xlu0 11
    %417 = vperm.xlu0 %416, %v272
    %v418 = vpop.permute.xlu0 %417
    %v420 = vlaneseq
    %v421 = vshrl.u32 %v420, 7
    %v422 = vsub.s32 0, %v421
    %v423 = vrot.slane %v415, %v422
    %v424 = vmul.f32 %v418, %v423
    %v425 = vadd.f32 %v414, %v424
    %v426 = vld [vmem:[#allocation5 + $0xa5] sm:$0x1]
    %427 = vset.pattern.permute.xlu0 13
    %428 = vperm.xlu0 %427, %v272
    %v429 = vpop.permute.xlu0 %428
    %v431 = vlaneseq
    %v432 = vshrl.u32 %v431, 7
    %v433 = vsub.s32 0, %v432
    %v434 = vrot.slane %v426, %v433
    %v435 = vmul.f32 %v429, %v434
    %v436 = vadd.f32 %v425, %v435
    %v437 = vld [vmem:[#allocation5 + $0xa7] sm:$0x1]
    %438 = vset.pattern.permute.xlu0 15
    %439 = vperm.xlu0 %438, %v272
    %v440 = vpop.permute.xlu0 %439
    %v442 = vlaneseq
    %v443 = vshrl.u32 %v442, 7
    %v444 = vsub.s32 0, %v443
    %v445 = vrot.slane %v437, %v444
    %v446 = vmul.f32 %v440, %v445
    %v447 = vadd.f32 %v436, %v446
    %v448 = vadd.f32 %v360, %v447
    %v449 = vld [vmem:[#allocation5 + $0x118] sm:$0x1]
    %v450 = vlaneseq
    %v451 = vshrl.u32 %v450, 7
    %v452 = vsub.s32 0, %v451
    %v453 = vrot.slane %v449, %v452
    %v454 = vadd.f32 %v448, %v453
    %v455 = vlaneseq
    %v456 = vand.u32 %v455, 127
    %vm457 = vcmp.lt.s32.totalorder %v456, 2
    %v458 = vsel %vm457, %v454, -1e+30
    %vm459 = vcmask 1041408
    %v460 = vsel %vm459, %v458, -inf
    %461 = vmax.xlane.f32.xlu0 %v460
    %v462 = vpop.xlane.xlu0 %461
    %v463 = vsub.f32 %v458, %v462
    %v464 = vmul.f32 %v463, 1.442695
    %v465 = vpow.pop %v464
    %v466 = vsel %vm459, %v465, 0.0
    %467 = vadd.xlane.f32.xlu0 %v466
    %v468 = vpop.xlane.xlu0 %467
    %v469 = vrcp.pop %v468
    %v470 = vmul.f32 %v465, %v469
    %vm471 = vcmask 9216
    %472 = vst.msk [vmem:[#allocation7] sm:$0x3] %vm471, %v470
    // Predicated region
    $region18: #{tpu_custom_call.1} parent=1 // pred_check
      _
    $region19: #{tpu_custom_call.1} parent=1 // pred_check_branch
      %474 = sbr.rel (0) target = $region21
    $region20: #{tpu_custom_call.1} parent=1 // pred_region
      %s476 = ssub.s32 32, 32
      %477 = vsyncadd [#allocation4], %s476
      %s479 = sshll.u32 [#allocation7], 4
      %s480 = int_to_ptr.vmem [resolvable:$true] %s479
      %482 = dma.vmem_to_hbm [thread:$0]  %s480, 32, %s2, [#allocation4]
    $region21: #{tpu_custom_call.1} parent=1 // pred_fallthru
      _
    // Predicated region
    $region22: #{tpu_custom_call.1} parent=1 // pred_check
      _
    $region23: #{tpu_custom_call.1} parent=1 // pred_check_branch
      %484 = sbr.rel (0) target = $region25
    $region24: #{tpu_custom_call.1} parent=1 // pred_region
      %485 = dma.done [#allocation4], 32
    $region25: #{tpu_custom_call.1} parent=1 // pred_fallthru
      _
    %486 = vsyncpa [#allocation3], 1
    %487 = vsyncpa [#allocation6], 1
    %488 = vsyncpa [#allocation4], 1

</llo_original>
